<compile_context>
chip_gen: v6e
topology: v6e:2x2x1
jax: 0.10.0
libtpu: 0.0.40
codegen_flags: <defaults>
</compile_context>

<pallas_src>
import functools
import math

import jax
import jax.numpy as jnp
from jax.experimental import pallas as pl
from jax.experimental.pallas import tpu as pltpu

WORLD_SIZE = 1.0      # self.box
DT = 0.1              # self.dt
SDIM = 5              # state dimension
ODIM = 2              # observation dimension
PAD = 8               # padded tile dimension (sublane multiple)
OUTW = 2 * PAD        # packed per-step output width: [P_sym | x,k0,k1]

# per-step SMEM table layout (6 f32 per step)
_TA0, _TA1, _TVS0, _TVS1, _TVK0, _TVK1 = range(6)
STEP_W = 6

# constant SMEM pack layout (10 f32, all exps pre-hoisted)
_CG0, _CG1, _COG0, _COG1, _CQ3, _CQ4, _CS0, _CS1, _CK0, _CK1 = range(10)

_TWO_PI = 2.0 * math.pi
_INV_TWO_PI = 1.0 / _TWO_PI


def _range_angle(ang):
    """Wrap angle into (-pi, pi] (floor-mod form; avoids float-rem lowering)."""
    ang = ang - _TWO_PI * jnp.floor(ang * _INV_TWO_PI)
    return jnp.where(ang > math.pi, ang - _TWO_PI, ang)


def _rollout_kernel(tbl_ref, cst_ref, init_ref, out_ref, p_scr, x_scr, *, dt, box):
    t = pl.program_id(0)
    r = jax.lax.broadcasted_iota(jnp.int32, (PAD, PAD), 0)
    c = jax.lax.broadcasted_iota(jnp.int32, (PAD, PAD), 1)

    @pl.when(t == 0)
    def _():
        p_scr[...] = init_ref[0]          # P0 zero-padded to (8,8)
        x_scr[...] = init_ref[1]          # x0 replicated along rows, col k = x0[k]

    def cs(i):   # constant SMEM scalar -> (8,8) f32 splat
        return jnp.full((PAD, PAD), cst_ref[i], dtype=jnp.float32)

    base = t * STEP_W

    def ts(i):   # per-step SMEM scalar -> (8,8) f32 splat
        return jnp.full((PAD, PAD), tbl_ref[base + i], dtype=jnp.float32)

    g0, g1 = cs(_CG0), cs(_CG1)
    og0, og1 = cs(_COG0), cs(_COG1)
    q3, q4 = cs(_CQ3), cs(_CQ4)                    # exp(2*n1[3]), exp(2*n1[4])
    e2s0, e2s1 = cs(_CS0), cs(_CS1)                # exp(2*n2_sigma)
    e2k0, e2k1 = cs(_CK0), cs(_CK1)                # exp(2*n2_kappa)

    a0, a1 = ts(_TA0), ts(_TA1)
    vs0, vs1 = ts(_TVS0), ts(_TVS1)
    vk0, vk1 = ts(_TVK0), ts(_TVK1)

    P = p_scr[...]                                  # carried belief covariance
    x_prev = x_scr[...]                             # carried belief mean (row tile)
    Q = init_ref[2]                                 # diag(exp(2*n1)), padded; L == eye

    # ---------------- dynamics(x, a, w=0) --------------------------------------
    ang_prev = jnp.broadcast_to(x_prev[:, 2:3], (PAD, PAD))   # lane broadcast of x[2]
    vel = g0 * a0                                   # 0*vel + g[0]*a[0]
    ang_vel = g1 * a1                               # 0*ang_vel + g[1]*a[1]
    ang = _range_angle(ang_prev + ang_vel * dt)
    cos_a = jnp.cos(ang)
    sin_a = jnp.sin(ang)

    alpha = -vel * sin_a * dt                       # A[0,2]
    beta = vel * cos_a * dt                         # A[1,2]

    # ---------------- P_ = A P A^T + Q, closed form (no MXU) -------------------
    P_row2 = jnp.broadcast_to(P[2:3, :], (PAD, PAD))           # sublane broadcast
    B = (jnp.where(r < 3, P, 0.0)
         + jnp.where(r == 0, alpha * P_row2, 0.0)
         + jnp.where(r == 1, beta * P_row2, 0.0))              # B = A @ P
    B_col2 = jnp.broadcast_to(B[:, 2:3], (PAD, PAD))           # lane broadcast
    APAt = (jnp.where(c < 3, B, 0.0)
            + jnp.where(c == 0, alpha * B_col2, 0.0)
            + jnp.where(c == 1, beta * B_col2, 0.0))           # (A P) @ A^T
    P_pred = APAt + Q                                          # rows/cols >= 5 stay 0

    # ---------------- closed-form S, K (S is exactly diagonal) ------------------
    m0 = vel * vel * e2k0 + e2s0
    m1 = ang_vel * ang_vel * e2k1 + e2s1
    s0 = og0 * og0 * q3 + m0                       # S[0,0]; S[0,1] = S[1,0] = 0
    s1 = og1 * og1 * q4 + m1                       # S[1,1]
    # exact reciprocal (approx=True would also pass tolerance; keep torch.inverse fidelity)
    inv_s0 = pl.reciprocal(s0)
    inv_s1 = pl.reciprocal(s1)
    k0 = og0 * q3 * inv_s0                         # K[3,0]
    k1 = og1 * q4 * inv_s1                         # K[4,1]

    # ---------------- state update (Y is None path) -----------------------------
    innov0 = vel * vk0 + vs0                       # Y - observations(x_, 0, 0)
    innov1 = ang_vel * vk1 + vs1
    pos_delta = (jnp.where(c == 0, vel * cos_a * dt, 0.0)
                 + jnp.where(c == 1, vel * sin_a * dt, 0.0))
    x_new = (jnp.where(c < 2, jnp.clip(x_prev + pos_delta, -box, box), 0.0)
             + jnp.where(c == 2, ang, 0.0)
             + jnp.where(c == 3, vel + k0 * innov0, 0.0)
             + jnp.where(c == 4, ang_vel + k1 * innov1, 0.0))

    # ---------------- covariance update -----------------------------------------
    # I - K H = diag(1, 1, 1, 1 - k0*og0, 1 - k1*og1): a pure row-scale of P_.
    d3 = 1.0 - k0 * og0
    d4 = 1.0 - k1 * og1
    row_scale = (jnp.where(r < 3, 1.0, 0.0)
                 + jnp.where(r == 3, d3, 0.0)
                 + jnp.where(r == 4, d4, 0.0))
    P_new = row_scale * P_pred                      # (I - KH) P_
    eye5 = jnp.where((r == c) & (r < SDIM), 1.0, 0.0)
    P_sym = 0.5 * (P_new + jnp.transpose(P_new)) + 1e-6 * eye5   # true transpose (XLU)

    # ---------------- carry belief + packed per-step output ---------------------
    p_scr[...] = P_sym
    x_scr[...] = x_new

    extra = x_new + jnp.where(c == 5, k0, 0.0) + jnp.where(c == 6, k1, 0.0)
    out_ref[...] = jnp.concatenate([P_sym, extra], axis=1)      # one (8,16) store


@functools.partial(jax.jit, static_argnames=("dt", "box"))
def belief_rollout(x0, P0, actions, v_s, v_k, n1, n2_sigma, n2_kappa,
                   gains, obs_gains, dt=DT, box=WORLD_SIZE):
    """Apply BeliefStep.forward (Y=None; noise v_s/v_k supplied) T times in one call."""
    actions = jnp.asarray(actions, jnp.float32).reshape(-1, ODIM)
    v_s = jnp.asarray(v_s, jnp.float32).reshape(-1, ODIM)
    v_k = jnp.asarray(v_k, jnp.float32).reshape(-1, ODIM)
    T = actions.shape[0]

    # per-step SMEM table, flat: [a0, a1, vs0, vs1, vk0, vk1] per step
    tbl = jnp.concatenate([actions, v_s, v_k], axis=1).reshape(-1)

    # parameter-only exponentials hoisted out of the per-step body
    e2n1 = jnp.exp(2.0 * jnp.asarray(n1, jnp.float32))
    e2s = jnp.exp(2.0 * jnp.asarray(n2_sigma, jnp.float32))
    e2k = jnp.exp(2.0 * jnp.asarray(n2_kappa, jnp.float32))
    cst = jnp.concatenate([jnp.asarray(gains, jnp.float32).reshape(-1),
                           jnp.asarray(obs_gains, jnp.float32).reshape(-1),
                           e2n1[3:5], e2s, e2k])

    # resident (3,8,8) VMEM slab: [P0 padded, x0 row tile, Q = diag(exp(2*n1))]
    P0p = jnp.zeros((PAD, PAD), jnp.float32).at[:SDIM, :SDIM].set(
        jnp.asarray(P0, jnp.float32))
    x0p = jnp.zeros((PAD,), jnp.float32).at[:SDIM].set(
        jnp.asarray(x0, jnp.float32).reshape(-1))
    X0t = jnp.broadcast_to(x0p, (PAD, PAD))
    Qp = jnp.zeros((PAD, PAD), jnp.float32).at[:SDIM, :SDIM].set(jnp.diag(e2n1))
    init = jnp.stack([P0p, X0t, Qp])

    kernel = functools.partial(_rollout_kernel, dt=float(dt), box=float(box))
    out = pl.pallas_call(
        kernel,
        out_shape=jax.ShapeDtypeStruct((T, PAD, OUTW), jnp.float32),
        grid=(T,),
        in_specs=[
            pl.BlockSpec(memory_space=pltpu.MemorySpace.SMEM),   # per-step table
            pl.BlockSpec(memory_space=pltpu.MemorySpace.SMEM),   # constant pack
            pl.BlockSpec((3, PAD, PAD), lambda t: (0, 0, 0)),    # resident P0/x0/Q
        ],
        out_specs=pl.BlockSpec((None, PAD, OUTW), lambda t: (t, 0, 0)),
        scratch_shapes=[pltpu.VMEM((PAD, PAD), jnp.float32),     # P carried across steps
                        pltpu.VMEM((PAD, PAD), jnp.float32)],    # x carried across steps
        compiler_params=pltpu.CompilerParams(
            dimension_semantics=("arbitrary",)),
    )(tbl, cst, init)

    Ps = out[:, :SDIM, :SDIM]                        # (T, 5, 5)
    xs = out[:, 0, PAD:PAD + SDIM]                   # (T, 5)
    Ks = (jnp.zeros((T, SDIM, ODIM), jnp.float32)
          .at[:, 3, 0].set(out[:, 0, PAD + 5])
          .at[:, 4, 1].set(out[:, 0, PAD + 6]))      # K has exactly two nonzeros
    return xs, Ps, Ks


def belief_step(x, P, a, n1, n2_sigma, n2_kappa, gains, obs_gains, v_s, v_k,
                dt=DT, box=WORLD_SIZE):
    """Single BeliefStep.forward (module parity): a T=1 rollout."""
    xs, Ps, Ks = belief_rollout(x, P,
                                jnp.reshape(jnp.asarray(a, jnp.float32), (1, ODIM)),
                                jnp.reshape(jnp.asarray(v_s, jnp.float32), (1, ODIM)),
                                jnp.reshape(jnp.asarray(v_k, jnp.float32), (1, ODIM)),
                                n1, n2_sigma, n2_kappa, gains, obs_gains,
                                dt=float(dt), box=float(box))
    return xs[0], Ps[0], Ks[0]


def belief_step_ref(x, P, a, n1, n2_sigma, n2_kappa, gains, obs_gains, v_s, v_k,
                    dt=DT, box=WORLD_SIZE):
    """Plain-JAX mirror of the PyTorch forward (for correctness check)."""
    vel = gains[0] * a[0]
    ang_vel = gains[1] * a[1]
    ang = _range_angle(x[2] + ang_vel * dt)
    px = jnp.clip(x[0] + vel * jnp.cos(ang) * dt, -box, box)
    py = jnp.clip(x[1] + vel * jnp.sin(ang) * dt, -box, box)
    x_ = jnp.stack([px, py, ang, vel, ang_vel])

    A = jnp.zeros((5, 5)).at[:3, :3].set(jnp.eye(3))
    A = A.at[0, 2].set(-vel * jnp.sin(ang) * dt).at[1, 2].set(vel * jnp.cos(ang) * dt)
    H = jnp.zeros((2, 5)).at[0, 3].set(obs_gains[0]).at[1, 4].set(obs_gains[1])
    Q = jnp.diag(jnp.exp(2.0 * n1))
    MMt = jnp.diag(x_[-2:] ** 2 * jnp.exp(2.0 * n2_kappa) + jnp.exp(2.0 * n2_sigma))

    P_ = A @ P @ A.T + Q
    S = H @ P_ @ H.T + MMt
    K = P_ @ H.T @ jnp.linalg.inv(S)
    innov = x_[-2:] * v_k + v_s                      # Y - observations(x_, 0, 0)
    x_new = x_ + K @ innov
    P_new = (jnp.eye(5) - K @ H) @ P_
    P_new = 0.5 * (P_new + P_new.T) + 1e-6 * jnp.eye(5)
    return x_new, P_new, K


if __name__ == "__main__":
    key = jax.random.PRNGKey(0)
    ka, ks, kk = jax.random.split(key, 3)
    T = 8

    # deterministic parameter init (shapes from BeliefStep.__init__)
    n1 = jnp.array([-1.0, -1.0, -1.2, -0.8, -0.9], jnp.float32)      # (5,)
    n2 = jnp.array([-1.1, -1.3, -0.7, -0.6], jnp.float32)            # (4,)
    n2_sigma, n2_kappa = n2[:2], n2[2:]
    gains = jnp.array([1.0, math.pi / 2.0], jnp.float32)             # (2,)
    obs_gains = jnp.array([0.9, 1.1], jnp.float32)                   # (2,)

    # inputs
    x0 = jnp.array([0.2, -0.3, 0.5, 0.0, 0.0], jnp.float32)          # state (5,)
    P0 = (0.1 * jnp.eye(5) + 0.01 * jnp.ones((5, 5))).astype(jnp.float32)
    actions = jax.random.uniform(ka, (T, ODIM), jnp.float32, minval=-1.0, maxval=1.0)

    # observation noise (torch.randn(...) inside forward -> drawn here, Y=None path)
    v_s = jnp.exp(n2_sigma)[None, :] * jax.random.normal(ks, (T, ODIM), jnp.float32)
    v_k = jnp.exp(n2_kappa)[None, :] * jax.random.normal(kk, (T, ODIM), jnp.float32)
    # NOTE: the in-forward draw w = exp(n1)*randn(5) never affects the output
    # (dynamics uses w*0 and L() unconditionally returns eye(5)), so it is omitted.

    xs, Ps, Ks = belief_rollout(x0, P0, actions, v_s, v_k,
                                n1, n2_sigma, n2_kappa, gains, obs_gains)
    jax.block_until_ready((xs, Ps, Ks))

    # single-step wrapper (module-forward parity)
    x1, P1, K1 = belief_step(x0, P0, actions[0], n1, n2_sigma, n2_kappa,
                             gains, obs_gains, v_s[0], v_k[0])
    jax.block_until_ready((x1, P1, K1))

    # pure-JAX reference rollout, compared per step
    xr, Pr = x0, P0
    for t in range(T):
        xr, Pr, Kr = belief_step_ref(xr, Pr, actions[t], n1, n2_sigma, n2_kappa,
                                     gains, obs_gains, v_s[t], v_k[t])
        assert bool(jnp.allclose(xs[t], xr, atol=2e-3, rtol=2e-2)), (t, xs[t], xr)
        assert bool(jnp.allclose(Ps[t], Pr, atol=2e-3, rtol=2e-2)), (t, Ps[t], Pr)
        assert bool(jnp.allclose(Ks[t], Kr, atol=2e-3, rtol=2e-2)), (t, Ks[t], Kr)
        if t == 0:
            assert bool(jnp.allclose(x1, xr, atol=2e-3, rtol=2e-2))
            assert bool(jnp.allclose(P1, Pr, atol=2e-3, rtol=2e-2))
            assert bool(jnp.allclose(K1, Kr, atol=2e-3, rtol=2e-2))
    # TODO(synk): explicit-Y code path (forward(Y=...)) not wired; only Y=None supported.
    print("KERNEL_OK")
</pallas_src>

<mosaic_0001>
module attributes {stable_mosaic.version = 11 : i64} {
  func.func @_rollout_kernel(%arg0: i32, %arg1: memref<48xf32, #tpu.memory_space<smem>>, %arg2: memref<10xf32, #tpu.memory_space<smem>>, %arg3: memref<3x8x8xf32, #tpu.memory_space<vmem>>, %arg4: memref<1x8x16xf32, #tpu.memory_space<vmem>>, %arg5: memref<8x8xf32, #tpu.memory_space<vmem>>, %arg6: memref<8x8xf32, #tpu.memory_space<vmem>>) attributes {dimension_semantics = [#tpu.dimension_semantics<arbitrary>], iteration_bounds = array<i64: 8>, scalar_prefetch = 0 : i64, scratch_operands = 2 : i64, tpu.core_type = #tpu.core_type<tc>, window_params = [{transform_indices = @transform_0, window_bounds = array<i64: 48>}, {transform_indices = @transform_1, window_bounds = array<i64: 10>}, {pipeline_mode = #tpu.pipeline_mode<synchronous>, transform_indices = @transform_2, window_bounds = array<i64: 3, 8, 8>}, {transform_indices = @transform_3, window_bounds = array<i64: 1, 8, 16>}]} {
    %0 = tpu.iota {dimensions = array<i32: 0>} : vector<8x8xi32>
    %1 = tpu.iota {dimensions = array<i32: 1>} : vector<8x8xi32>
    %c0_i32 = arith.constant 0 : i32
    %2 = arith.cmpi eq, %arg0, %c0_i32 : i32
    %3 = arith.extui %2 : i1 to i32
    %c0_i32_0 = arith.constant 0 : i32
    %4 = arith.cmpi ne, %3, %c0_i32_0 : i32
    scf.if %4 {
      %c0_69 = arith.constant 0 : index
      %c0_70 = arith.constant 0 : index
      %c0_71 = arith.constant 0 : index
      %239 = vector.load %arg3[%c0_69, %c0_70, %c0_71] : memref<3x8x8xf32, #tpu.memory_space<vmem>>, vector<1x8x8xf32>
      %240 = vector.shape_cast %239 : vector<1x8x8xf32> to vector<8x8xf32>
      %c0_72 = arith.constant 0 : index
      %c0_73 = arith.constant 0 : index
      %241 = vector.load %arg5[%c0_72, %c0_73] : memref<8x8xf32, #tpu.memory_space<vmem>>, vector<8x8xf32>
      tpu.vector_store %arg5[%c0_72, %c0_73], %240 {strides = array<i32>} : memref<8x8xf32, #tpu.memory_space<vmem>>, vector<8x8xf32>,
      %c1_74 = arith.constant 1 : index
      %c0_75 = arith.constant 0 : index
      %c0_76 = arith.constant 0 : index
      %242 = vector.load %arg3[%c1_74, %c0_75, %c0_76] : memref<3x8x8xf32, #tpu.memory_space<vmem>>, vector<1x8x8xf32>
      %243 = vector.shape_cast %242 : vector<1x8x8xf32> to vector<8x8xf32>
      %c0_77 = arith.constant 0 : index
      %c0_78 = arith.constant 0 : index
      %244 = vector.load %arg6[%c0_77, %c0_78] : memref<8x8xf32, #tpu.memory_space<vmem>>, vector<8x8xf32>
      tpu.vector_store %arg6[%c0_77, %c0_78], %243 {strides = array<i32>} : memref<8x8xf32, #tpu.memory_space<vmem>>, vector<8x8xf32>,
    } else {
    }
    %c6_i32 = arith.constant 6 : i32
    %5 = arith.muli %arg0, %c6_i32 : i32
    %c0 = arith.constant 0 : index
    %6 = memref.load %arg2[%c0] : memref<10xf32, #tpu.memory_space<smem>>
    %7 = vector.broadcast %6 : f32 to vector<8x8xf32>
    %c1 = arith.constant 1 : index
    %8 = memref.load %arg2[%c1] : memref<10xf32, #tpu.memory_space<smem>>
    %9 = vector.broadcast %8 : f32 to vector<8x8xf32>
    %c2 = arith.constant 2 : index
    %10 = memref.load %arg2[%c2] : memref<10xf32, #tpu.memory_space<smem>>
    %11 = vector.broadcast %10 : f32 to vector<8x8xf32>
    %c3 = arith.constant 3 : index
    %12 = memref.load %arg2[%c3] : memref<10xf32, #tpu.memory_space<smem>>
    %13 = vector.broadcast %12 : f32 to vector<8x8xf32>
    %c4 = arith.constant 4 : index
    %14 = memref.load %arg2[%c4] : memref<10xf32, #tpu.memory_space<smem>>
    %15 = vector.broadcast %14 : f32 to vector<8x8xf32>
    %c5 = arith.constant 5 : index
    %16 = memref.load %arg2[%c5] : memref<10xf32, #tpu.memory_space<smem>>
    %17 = vector.broadcast %16 : f32 to vector<8x8xf32>
    %c6 = arith.constant 6 : index
    %18 = memref.load %arg2[%c6] : memref<10xf32, #tpu.memory_space<smem>>
    %19 = vector.broadcast %18 : f32 to vector<8x8xf32>
    %c7 = arith.constant 7 : index
    %20 = memref.load %arg2[%c7] : memref<10xf32, #tpu.memory_space<smem>>
    %21 = vector.broadcast %20 : f32 to vector<8x8xf32>
    %c8 = arith.constant 8 : index
    %22 = memref.load %arg2[%c8] : memref<10xf32, #tpu.memory_space<smem>>
    %23 = vector.broadcast %22 : f32 to vector<8x8xf32>
    %c9 = arith.constant 9 : index
    %24 = memref.load %arg2[%c9] : memref<10xf32, #tpu.memory_space<smem>>
    %25 = vector.broadcast %24 : f32 to vector<8x8xf32>
    %c0_i32_1 = arith.constant 0 : i32
    %26 = arith.addi %5, %c0_i32_1 : i32
    %27 = arith.index_cast %26 : i32 to index
    %28 = memref.load %arg1[%27] : memref<48xf32, #tpu.memory_space<smem>>
    %29 = vector.broadcast %28 : f32 to vector<8x8xf32>
    %c1_i32 = arith.constant 1 : i32
    %30 = arith.addi %5, %c1_i32 : i32
    %31 = arith.index_cast %30 : i32 to index
    %32 = memref.load %arg1[%31] : memref<48xf32, #tpu.memory_space<smem>>
    %33 = vector.broadcast %32 : f32 to vector<8x8xf32>
    %c2_i32 = arith.constant 2 : i32
    %34 = arith.addi %5, %c2_i32 : i32
    %35 = arith.index_cast %34 : i32 to index
    %36 = memref.load %arg1[%35] : memref<48xf32, #tpu.memory_space<smem>>
    %37 = vector.broadcast %36 : f32 to vector<8x8xf32>
    %c3_i32 = arith.constant 3 : i32
    %38 = arith.addi %5, %c3_i32 : i32
    %39 = arith.index_cast %38 : i32 to index
    %40 = memref.load %arg1[%39] : memref<48xf32, #tpu.memory_space<smem>>
    %41 = vector.broadcast %40 : f32 to vector<8x8xf32>
    %c4_i32 = arith.constant 4 : i32
    %42 = arith.addi %5, %c4_i32 : i32
    %43 = arith.index_cast %42 : i32 to index
    %44 = memref.load %arg1[%43] : memref<48xf32, #tpu.memory_space<smem>>
    %45 = vector.broadcast %44 : f32 to vector<8x8xf32>
    %c5_i32 = arith.constant 5 : i32
    %46 = arith.addi %5, %c5_i32 : i32
    %47 = arith.index_cast %46 : i32 to index
    %48 = memref.load %arg1[%47] : memref<48xf32, #tpu.memory_space<smem>>
    %49 = vector.broadcast %48 : f32 to vector<8x8xf32>
    %c0_2 = arith.constant 0 : index
    %c0_3 = arith.constant 0 : index
    %50 = vector.load %arg5[%c0_2, %c0_3] : memref<8x8xf32, #tpu.memory_space<vmem>>, vector<8x8xf32>
    %c0_4 = arith.constant 0 : index
    %c0_5 = arith.constant 0 : index
    %51 = vector.load %arg6[%c0_4, %c0_5] : memref<8x8xf32, #tpu.memory_space<vmem>>, vector<8x8xf32>
    %c2_6 = arith.constant 2 : index
    %c0_7 = arith.constant 0 : index
    %c0_8 = arith.constant 0 : index
    %52 = vector.load %arg3[%c2_6, %c0_7, %c0_8] : memref<3x8x8xf32, #tpu.memory_space<vmem>>, vector<1x8x8xf32>
    %53 = vector.shape_cast %52 : vector<1x8x8xf32> to vector<8x8xf32>
    %54 = vector.extract_strided_slice %51 {offsets = [0, 2], sizes = [8, 1], strides = [1, 1]} : vector<8x8xf32> to vector<8x1xf32>
    %55 = vector.shape_cast %54 : vector<8x1xf32> to vector<8x1xf32>
    %56 = vector.broadcast %55 : vector<8x1xf32> to vector<8x8xf32>
    %57 = arith.mulf %7, %29 : vector<8x8xf32>
    %58 = arith.mulf %9, %33 : vector<8x8xf32>
    %cst = arith.constant 1.000000e-01 : f32
    %59 = vector.broadcast %cst : f32 to vector<8x8xf32>
    %60 = arith.mulf %58, %59 : vector<8x8xf32>
    %61 = arith.addf %56, %60 : vector<8x8xf32>
    %cst_9 = arith.constant 0.159154937 : f32
    %62 = vector.broadcast %cst_9 : f32 to vector<8x8xf32>
    %63 = arith.mulf %61, %62 : vector<8x8xf32>
    %64 = math.floor %63 : vector<8x8xf32>
    %cst_10 = arith.constant 6.28318548 : f32
    %65 = vector.broadcast %cst_10 : f32 to vector<8x8xf32>
    %66 = arith.mulf %65, %64 : vector<8x8xf32>
    %67 = arith.subf %61, %66 : vector<8x8xf32>
    %cst_11 = arith.constant 3.14159274 : f32
    %68 = vector.broadcast %cst_11 : f32 to vector<8x8xf32>
    %69 = arith.cmpf ogt, %67, %68 : vector<8x8xf32>
    %cst_12 = arith.constant 6.28318548 : f32
    %70 = vector.broadcast %cst_12 : f32 to vector<8x8xf32>
    %71 = arith.subf %67, %70 : vector<8x8xf32>
    %72 = arith.select %69, %71, %67 : vector<8x8xi1>, vector<8x8xf32>
    %73 = math.cos %72 : vector<8x8xf32>
    %74 = math.sin %72 : vector<8x8xf32>
    %cst_13 = arith.constant 0.000000e+00 : f32
    %75 = vector.broadcast %cst_13 : f32 to vector<8x8xf32>
    %76 = arith.subf %75, %57 : vector<8x8xf32>
    %77 = arith.mulf %76, %74 : vector<8x8xf32>
    %cst_14 = arith.constant 1.000000e-01 : f32
    %78 = vector.broadcast %cst_14 : f32 to vector<8x8xf32>
    %79 = arith.mulf %77, %78 : vector<8x8xf32>
    %80 = arith.mulf %57, %73 : vector<8x8xf32>
    %cst_15 = arith.constant 1.000000e-01 : f32
    %81 = vector.broadcast %cst_15 : f32 to vector<8x8xf32>
    %82 = arith.mulf %80, %81 : vector<8x8xf32>
    %83 = vector.extract_strided_slice %50 {offsets = [2, 0], sizes = [1, 8], strides = [1, 1]} : vector<8x8xf32> to vector<1x8xf32>
    %84 = vector.shape_cast %83 : vector<1x8xf32> to vector<1x8xf32>
    %85 = vector.broadcast %84 : vector<1x8xf32> to vector<8x8xf32>
    %c3_i32_16 = arith.constant 3 : i32
    %86 = vector.broadcast %c3_i32_16 : i32 to vector<8x8xi32>
    %87 = arith.cmpi slt, %0, %86 : vector<8x8xi32>
    %cst_17 = arith.constant 0.000000e+00 : f32
    %88 = vector.broadcast %cst_17 : f32 to vector<8x8xf32>
    %89 = arith.select %87, %50, %88 : vector<8x8xi1>, vector<8x8xf32>
    %c0_i32_18 = arith.constant 0 : i32
    %90 = vector.broadcast %c0_i32_18 : i32 to vector<8x8xi32>
    %91 = arith.cmpi eq, %0, %90 : vector<8x8xi32>
    %92 = arith.mulf %79, %85 : vector<8x8xf32>
    %cst_19 = arith.constant 0.000000e+00 : f32
    %93 = vector.broadcast %cst_19 : f32 to vector<8x8xf32>
    %94 = arith.select %91, %92, %93 : vector<8x8xi1>, vector<8x8xf32>
    %95 = arith.addf %89, %94 : vector<8x8xf32>
    %c1_i32_20 = arith.constant 1 : i32
    %96 = vector.broadcast %c1_i32_20 : i32 to vector<8x8xi32>
    %97 = arith.cmpi eq, %0, %96 : vector<8x8xi32>
    %98 = arith.mulf %82, %85 : vector<8x8xf32>
    %cst_21 = arith.constant 0.000000e+00 : f32
    %99 = vector.broadcast %cst_21 : f32 to vector<8x8xf32>
    %100 = arith.select %97, %98, %99 : vector<8x8xi1>, vector<8x8xf32>
    %101 = arith.addf %95, %100 : vector<8x8xf32>
    %102 = vector.extract_strided_slice %101 {offsets = [0, 2], sizes = [8, 1], strides = [1, 1]} : vector<8x8xf32> to vector<8x1xf32>
    %103 = vector.shape_cast %102 : vector<8x1xf32> to vector<8x1xf32>
    %104 = vector.broadcast %103 : vector<8x1xf32> to vector<8x8xf32>
    %c3_i32_22 = arith.constant 3 : i32
    %105 = vector.broadcast %c3_i32_22 : i32 to vector<8x8xi32>
    %106 = arith.cmpi slt, %1, %105 : vector<8x8xi32>
    %cst_23 = arith.constant 0.000000e+00 : f32
    %107 = vector.broadcast %cst_23 : f32 to vector<8x8xf32>
    %108 = arith.select %106, %101, %107 : vector<8x8xi1>, vector<8x8xf32>
    %c0_i32_24 = arith.constant 0 : i32
    %109 = vector.broadcast %c0_i32_24 : i32 to vector<8x8xi32>
    %110 = arith.cmpi eq, %1, %109 : vector<8x8xi32>
    %111 = arith.mulf %79, %104 : vector<8x8xf32>
    %cst_25 = arith.constant 0.000000e+00 : f32
    %112 = vector.broadcast %cst_25 : f32 to vector<8x8xf32>
    %113 = arith.select %110, %111, %112 : vector<8x8xi1>, vector<8x8xf32>
    %114 = arith.addf %108, %113 : vector<8x8xf32>
    %c1_i32_26 = arith.constant 1 : i32
    %115 = vector.broadcast %c1_i32_26 : i32 to vector<8x8xi32>
    %116 = arith.cmpi eq, %1, %115 : vector<8x8xi32>
    %117 = arith.mulf %82, %104 : vector<8x8xf32>
    %cst_27 = arith.constant 0.000000e+00 : f32
    %118 = vector.broadcast %cst_27 : f32 to vector<8x8xf32>
    %119 = arith.select %116, %117, %118 : vector<8x8xi1>, vector<8x8xf32>
    %120 = arith.addf %114, %119 : vector<8x8xf32>
    %121 = arith.addf %120, %53 : vector<8x8xf32>
    %122 = arith.mulf %57, %57 : vector<8x8xf32>
    %123 = arith.mulf %122, %23 : vector<8x8xf32>
    %124 = arith.addf %123, %19 : vector<8x8xf32>
    %125 = arith.mulf %58, %58 : vector<8x8xf32>
    %126 = arith.mulf %125, %25 : vector<8x8xf32>
    %127 = arith.addf %126, %21 : vector<8x8xf32>
    %128 = arith.mulf %11, %11 : vector<8x8xf32>
    %129 = arith.mulf %128, %15 : vector<8x8xf32>
    %130 = arith.addf %129, %124 : vector<8x8xf32>
    %131 = arith.mulf %13, %13 : vector<8x8xf32>
    %132 = arith.mulf %131, %17 : vector<8x8xf32>
    %133 = arith.addf %132, %127 : vector<8x8xf32>
    %134 = tpu.reciprocal %130 : vector<8x8xf32> -> vector<8x8xf32>
    %135 = tpu.reciprocal %133 : vector<8x8xf32> -> vector<8x8xf32>
    %136 = arith.mulf %11, %15 : vector<8x8xf32>
    %137 = arith.mulf %136, %134 : vector<8x8xf32>
    %138 = arith.mulf %13, %17 : vector<8x8xf32>
    %139 = arith.mulf %138, %135 : vector<8x8xf32>
    %140 = arith.mulf %57, %45 : vector<8x8xf32>
    %141 = arith.addf %140, %37 : vector<8x8xf32>
    %142 = arith.mulf %58, %49 : vector<8x8xf32>
    %143 = arith.addf %142, %41 : vector<8x8xf32>
    %c0_i32_28 = arith.constant 0 : i32
    %144 = vector.broadcast %c0_i32_28 : i32 to vector<8x8xi32>
    %145 = arith.cmpi eq, %1, %144 : vector<8x8xi32>
    %146 = arith.mulf %57, %73 : vector<8x8xf32>
    %cst_29 = arith.constant 1.000000e-01 : f32
    %147 = vector.broadcast %cst_29 : f32 to vector<8x8xf32>
    %148 = arith.mulf %146, %147 : vector<8x8xf32>
    %cst_30 = arith.constant 0.000000e+00 : f32
    %149 = vector.broadcast %cst_30 : f32 to vector<8x8xf32>
    %150 = arith.select %145, %148, %149 : vector<8x8xi1>, vector<8x8xf32>
    %c1_i32_31 = arith.constant 1 : i32
    %151 = vector.broadcast %c1_i32_31 : i32 to vector<8x8xi32>
    %152 = arith.cmpi eq, %1, %151 : vector<8x8xi32>
    %153 = arith.mulf %57, %74 : vector<8x8xf32>
    %cst_32 = arith.constant 1.000000e-01 : f32
    %154 = vector.broadcast %cst_32 : f32 to vector<8x8xf32>
    %155 = arith.mulf %153, %154 : vector<8x8xf32>
    %cst_33 = arith.constant 0.000000e+00 : f32
    %156 = vector.broadcast %cst_33 : f32 to vector<8x8xf32>
    %157 = arith.select %152, %155, %156 : vector<8x8xi1>, vector<8x8xf32>
    %158 = arith.addf %150, %157 : vector<8x8xf32>
    %c2_i32_34 = arith.constant 2 : i32
    %159 = vector.broadcast %c2_i32_34 : i32 to vector<8x8xi32>
    %160 = arith.cmpi slt, %1, %159 : vector<8x8xi32>
    %161 = arith.addf %51, %158 : vector<8x8xf32>
    %cst_35 = arith.constant -1.000000e+00 : f32
    %cst_36 = arith.constant 1.000000e+00 : f32
    %162 = vector.broadcast %cst_35 : f32 to vector<8x8xf32>
    %163 = arith.maximumf %162, %161 : vector<8x8xf32>
    %164 = vector.broadcast %cst_36 : f32 to vector<8x8xf32>
    %165 = arith.minimumf %164, %163 : vector<8x8xf32>
    %cst_37 = arith.constant 0.000000e+00 : f32
    %166 = vector.broadcast %cst_37 : f32 to vector<8x8xf32>
    %167 = arith.select %160, %165, %166 : vector<8x8xi1>, vector<8x8xf32>
    %c2_i32_38 = arith.constant 2 : i32
    %168 = vector.broadcast %c2_i32_38 : i32 to vector<8x8xi32>
    %169 = arith.cmpi eq, %1, %168 : vector<8x8xi32>
    %cst_39 = arith.constant 0.000000e+00 : f32
    %170 = vector.broadcast %cst_39 : f32 to vector<8x8xf32>
    %171 = arith.select %169, %72, %170 : vector<8x8xi1>, vector<8x8xf32>
    %172 = arith.addf %167, %171 : vector<8x8xf32>
    %c3_i32_40 = arith.constant 3 : i32
    %173 = vector.broadcast %c3_i32_40 : i32 to vector<8x8xi32>
    %174 = arith.cmpi eq, %1, %173 : vector<8x8xi32>
    %175 = arith.mulf %137, %141 : vector<8x8xf32>
    %176 = arith.addf %57, %175 : vector<8x8xf32>
    %cst_41 = arith.constant 0.000000e+00 : f32
    %177 = vector.broadcast %cst_41 : f32 to vector<8x8xf32>
    %178 = arith.select %174, %176, %177 : vector<8x8xi1>, vector<8x8xf32>
    %179 = arith.addf %172, %178 : vector<8x8xf32>
    %c4_i32_42 = arith.constant 4 : i32
    %180 = vector.broadcast %c4_i32_42 : i32 to vector<8x8xi32>
    %181 = arith.cmpi eq, %1, %180 : vector<8x8xi32>
    %182 = arith.mulf %139, %143 : vector<8x8xf32>
    %183 = arith.addf %58, %182 : vector<8x8xf32>
    %cst_43 = arith.constant 0.000000e+00 : f32
    %184 = vector.broadcast %cst_43 : f32 to vector<8x8xf32>
    %185 = arith.select %181, %183, %184 : vector<8x8xi1>, vector<8x8xf32>
    %186 = arith.addf %179, %185 : vector<8x8xf32>
    %187 = arith.mulf %137, %11 : vector<8x8xf32>
    %cst_44 = arith.constant 1.000000e+00 : f32
    %188 = vector.broadcast %cst_44 : f32 to vector<8x8xf32>
    %189 = arith.subf %188, %187 : vector<8x8xf32>
    %190 = arith.mulf %139, %13 : vector<8x8xf32>
    %cst_45 = arith.constant 1.000000e+00 : f32
    %191 = vector.broadcast %cst_45 : f32 to vector<8x8xf32>
    %192 = arith.subf %191, %190 : vector<8x8xf32>
    %c3_i32_46 = arith.constant 3 : i32
    %193 = vector.broadcast %c3_i32_46 : i32 to vector<8x8xi32>
    %194 = arith.cmpi slt, %0, %193 : vector<8x8xi32>
    %cst_47 = arith.constant 1.000000e+00 : f32
    %cst_48 = arith.constant 0.000000e+00 : f32
    %195 = vector.broadcast %cst_47 : f32 to vector<8x8xf32>
    %196 = vector.broadcast %cst_48 : f32 to vector<8x8xf32>
    %197 = arith.select %194, %195, %196 : vector<8x8xi1>, vector<8x8xf32>
    %c3_i32_49 = arith.constant 3 : i32
    %198 = vector.broadcast %c3_i32_49 : i32 to vector<8x8xi32>
    %199 = arith.cmpi eq, %0, %198 : vector<8x8xi32>
    %cst_50 = arith.constant 0.000000e+00 : f32
    %200 = vector.broadcast %cst_50 : f32 to vector<8x8xf32>
    %201 = arith.select %199, %189, %200 : vector<8x8xi1>, vector<8x8xf32>
    %202 = arith.addf %197, %201 : vector<8x8xf32>
    %c4_i32_51 = arith.constant 4 : i32
    %203 = vector.broadcast %c4_i32_51 : i32 to vector<8x8xi32>
    %204 = arith.cmpi eq, %0, %203 : vector<8x8xi32>
    %cst_52 = arith.constant 0.000000e+00 : f32
    %205 = vector.broadcast %cst_52 : f32 to vector<8x8xf32>
    %206 = arith.select %204, %192, %205 : vector<8x8xi1>, vector<8x8xf32>
    %207 = arith.addf %202, %206 : vector<8x8xf32>
    %208 = arith.mulf %207, %121 : vector<8x8xf32>
    %209 = arith.cmpi eq, %0, %1 : vector<8x8xi32>
    %c5_i32_53 = arith.constant 5 : i32
    %210 = vector.broadcast %c5_i32_53 : i32 to vector<8x8xi32>
    %211 = arith.cmpi slt, %0, %210 : vector<8x8xi32>
    %212 = arith.andi %209, %211 : vector<8x8xi1>
    %cst_54 = arith.constant 1.000000e+00 : f32
    %cst_55 = arith.constant 0.000000e+00 : f32
    %213 = vector.broadcast %cst_54 : f32 to vector<8x8xf32>
    %214 = vector.broadcast %cst_55 : f32 to vector<8x8xf32>
    %215 = arith.select %212, %213, %214 : vector<8x8xi1>, vector<8x8xf32>
    %216 = tpu.transpose %208, [1, 0] : vector<8x8xf32> -> vector<8x8xf32>
    %217 = arith.addf %208, %216 : vector<8x8xf32>
    %cst_56 = arith.constant 5.000000e-01 : f32
    %218 = vector.broadcast %cst_56 : f32 to vector<8x8xf32>
    %219 = arith.mulf %218, %217 : vector<8x8xf32>
    %cst_57 = arith.constant 9.99999997E-7 : f32
    %220 = vector.broadcast %cst_57 : f32 to vector<8x8xf32>
    %221 = arith.mulf %220, %215 : vector<8x8xf32>
    %222 = arith.addf %219, %221 : vector<8x8xf32>
    %c0_58 = arith.constant 0 : index
    %c0_59 = arith.constant 0 : index
    %223 = vector.load %arg5[%c0_58, %c0_59] : memref<8x8xf32, #tpu.memory_space<vmem>>, vector<8x8xf32>
    tpu.vector_store %arg5[%c0_58, %c0_59], %222 {strides = array<i32>} : memref<8x8xf32, #tpu.memory_space<vmem>>, vector<8x8xf32>,
    %c0_60 = arith.constant 0 : index
    %c0_61 = arith.constant 0 : index
    %224 = vector.load %arg6[%c0_60, %c0_61] : memref<8x8xf32, #tpu.memory_space<vmem>>, vector<8x8xf32>
    tpu.vector_store %arg6[%c0_60, %c0_61], %186 {strides = array<i32>} : memref<8x8xf32, #tpu.memory_space<vmem>>, vector<8x8xf32>,
    %c5_i32_62 = arith.constant 5 : i32
    %225 = vector.broadcast %c5_i32_62 : i32 to vector<8x8xi32>
    %226 = arith.cmpi eq, %1, %225 : vector<8x8xi32>
    %cst_63 = arith.constant 0.000000e+00 : f32
    %227 = vector.broadcast %cst_63 : f32 to vector<8x8xf32>
    %228 = arith.select %226, %137, %227 : vector<8x8xi1>, vector<8x8xf32>
    %229 = arith.addf %186, %228 : vector<8x8xf32>
    %c6_i32_64 = arith.constant 6 : i32
    %230 = vector.broadcast %c6_i32_64 : i32 to vector<8x8xi32>
    %231 = arith.cmpi eq, %1, %230 : vector<8x8xi32>
    %cst_65 = arith.constant 0.000000e+00 : f32
    %232 = vector.broadcast %cst_65 : f32 to vector<8x8xf32>
    %233 = arith.select %231, %139, %232 : vector<8x8xi1>, vector<8x8xf32>
    %234 = arith.addf %229, %233 : vector<8x8xf32>
    %235 = tpu.concatenate %222, %234 in 1 : vector<8x8xf32>, vector<8x8xf32> -> vector<8x16xf32>
    %c0_66 = arith.constant 0 : index
    %c0_67 = arith.constant 0 : index
    %c0_68 = arith.constant 0 : index
    %236 = vector.load %arg4[%c0_66, %c0_67, %c0_68] : memref<1x8x16xf32, #tpu.memory_space<vmem>>, vector<1x8x16xf32>
    %237 = vector.shape_cast %236 : vector<1x8x16xf32> to vector<8x16xf32>
    %238 = vector.shape_cast %235 : vector<8x16xf32> to vector<1x8x16xf32>
    tpu.vector_store %arg4[%c0_66, %c0_67, %c0_68], %238 {strides = array<i32>} : memref<1x8x16xf32, #tpu.memory_space<vmem>>, vector<1x8x16xf32>,
    return
  }
  func.func @transform_0(%arg0: i32) -> i32 {
    %c0_i32 = arith.constant 0 : i32
    %c0_i32_0 = arith.constant 0 : i32
    return %c0_i32 : i32
  }
  func.func @transform_1(%arg0: i32) -> i32 {
    %c0_i32 = arith.constant 0 : i32
    %c0_i32_0 = arith.constant 0 : i32
    return %c0_i32 : i32
  }
  func.func @transform_2(%arg0: i32) -> (i32, i32, i32) {
    %c0_i32 = arith.constant 0 : i32
    %c0_i32_0 = arith.constant 0 : i32
    %c0_i32_1 = arith.constant 0 : i32
    %c0_i32_2 = arith.constant 0 : i32
    return %c0_i32, %c0_i32_0, %c0_i32_1 : i32, i32, i32
  }
  func.func @transform_3(%arg0: i32) -> (i32, i32, i32) {
    %c0_i32 = arith.constant 0 : i32
    %c0_i32_0 = arith.constant 0 : i32
    %c0_i32_1 = arith.constant 0 : i32
    return %arg0, %c0_i32, %c0_i32_0 : i32, i32, i32
  }
}

</mosaic_0001>

<llo_original>
// kernel: belief_rollout.1
$region0: #{belief_rollout.1}
  #allocation0 [shape = 'u32[]', space=smem, size = 0x4, offset = 0x4, fixed_abs, tag = 'smem constant byte address 0x4 - core index']
  #allocation1 [shape = 'u32[144,128]{1,0:T(1,128)}', space=vmem, size = 0x12000, scoped, tag = 'internal scratch']
  #allocation2 [shape = 'f32[8,8]{1,0:T(8,128)}', space=vmem, size = 0x1000, scoped, tag = 'scratch operand']
  #allocation3 [shape = 'f32[8,8]{1,0:T(8,128)}', space=vmem, size = 0x1000, scoped, tag = 'scratch operand']
  %s0 = inlined_call_operand.vmem [shape: f32[48], index: 0, kind: input, shape index: {}]
  %s1 = inlined_call_operand.vmem [shape: f32[10], index: 1, kind: input, shape index: {}]
  %s2 = inlined_call_operand.vmem [shape: f32[3,8,8], index: 2, kind: input, shape index: {}]
  %s3 = inlined_call_operand.vmem [shape: f32[8,8,16], index: 3, kind: output, shape index: {}]
  %s4 = sld [smem:[#allocation0]]
  $region57: #{belief_rollout.1} parent=0
    _
  %s6 = ssub.s32 1, %s4
  %s7 = scalar_select 0, %s6, %s4
  $region1: #{belief_rollout.1} parent=0
    #allocation4 [shape = 'u8[512]{0}', space=smem, size = 0x200, scoped, tag = 'input window, operand 0, single buffered']
    #allocation5 [shape = 's32[2]{0}', space=sflag, size = 0x8, scoped, tag = 'scoped memory for belief_rollout.1']
    #allocation6 [shape = 'u8[512]{0}', space=smem, size = 0x200, scoped, tag = 'input window, operand 1, single buffered']
    #allocation7 [shape = 's32[1]{0}', space=sflag, size = 0x4, scoped, tag = 'scoped memory for belief_rollout.1']
    %8 = vsyncpa [#allocation5], 0
    %9 = vsyncpa [#allocation7], 0
    loop: start=0, step=1, limit=10
    $region2: #{belief_rollout.1} parent=1 // loop_pre_header
      _
    $region3: #{belief_rollout.1} parent=1 // loop_header
      %s11 = sphi 0, %s15
      %p12 = scmp.ge.s32.totalorder %s11, 10
      %s19 = sphi 0, %s19
      %s21 = sphi 0, %s19
      %s22 = sphi 0, %s21
      %s36 = sphi 0, %s22
      %s40 = sphi 0, %s40
      %s42 = sphi 0, %s40
      %s43 = sphi 0, %s42
      %s57 = sphi 0, %s43
      %s61 = sphi 0, %s61
      %s63 = sphi 0, %s61
      %s64 = sphi 0, %s63
      %s78 = sphi 0, %s64
      %s84 = sphi 0, %s86
      %s87 = sphi 0, %s84
      %s88 = sphi 0, %s87
      %s104 = sphi 0, %s88
    $region4: #{belief_rollout.1} parent=1 // loop_header_branch
      %14 = sbr.rel (%p12) target = $region8
    $region5: #{belief_rollout.1} parent=1 // loop_body
      %s16 = ssub.s32 %s11, 1
      %s17 = ssub.s32 %s11, 2
      %s18 = sadd.s32 %s11, 1
      %s20 = sadd.s32 %s19, 1
      %p23 = scmp.eq.s32.totalorder %s11, 7
      %p24 = scmp.ne.s32.totalorder %s19, %s21
      %p25 = scmp.eq.s32.totalorder %s11, 0
      %p26 = por %p24, %p25
      %p27 = scmp.ne.s32.totalorder %s19, %s21
      %p28 = scmp.eq.s32.totalorder %s16, 7
      %p29 = por %p27, %p28
      %p30 = scmp.ne.s32.totalorder %s21, %s22
      %p31 = scmp.eq.s32.totalorder %s16, 0
      %p32 = por %p30, %p31
      %p33 = scmp.ne.s32.totalorder %s21, %s22
      %p34 = scmp.eq.s32.totalorder %s17, 7
      %p35 = por %p33, %p34
      %p37 = scmp.ne.s32.totalorder %s22, %s36
      %p38 = scmp.eq.s32.totalorder %s17, 0
      %p39 = por %p37, %p38
      %s41 = sadd.s32 %s40, 1
      %p44 = scmp.eq.s32.totalorder %s11, 7
      %p45 = scmp.ne.s32.totalorder %s40, %s42
      %p46 = scmp.eq.s32.totalorder %s11, 0
      %p47 = por %p45, %p46
      %p48 = scmp.ne.s32.totalorder %s40, %s42
      %p49 = scmp.eq.s32.totalorder %s16, 7
      %p50 = por %p48, %p49
      %p51 = scmp.ne.s32.totalorder %s42, %s43
      %p52 = scmp.eq.s32.totalorder %s16, 0
      %p53 = por %p51, %p52
      %p54 = scmp.ne.s32.totalorder %s42, %s43
      %p55 = scmp.eq.s32.totalorder %s17, 7
      %p56 = por %p54, %p55
      %p58 = scmp.ne.s32.totalorder %s43, %s57
      %p59 = scmp.eq.s32.totalorder %s17, 0
      %p60 = por %p58, %p59
      %s62 = sadd.s32 %s61, 1
      %p65 = scmp.eq.s32.totalorder %s11, 7
      %p66 = scmp.ne.s32.totalorder %s61, %s63
      %p67 = scmp.eq.s32.totalorder %s11, 0
      %p68 = por %p66, %p67
      %p69 = scmp.ne.s32.totalorder %s61, %s63
      %p70 = scmp.eq.s32.totalorder %s16, 7
      %p71 = por %p69, %p70
      %p72 = scmp.ne.s32.totalorder %s63, %s64
      %p73 = scmp.eq.s32.totalorder %s16, 0
      %p74 = por %p72, %p73
      %p75 = scmp.ne.s32.totalorder %s63, %s64
      %p76 = scmp.eq.s32.totalorder %s17, 7
      %p77 = por %p75, %p76
      %p79 = scmp.ne.s32.totalorder %s64, %s78
      %p80 = scmp.eq.s32.totalorder %s17, 0
      %p81 = por %p79, %p80
      %s82 = ssub.s32 %s11, %s18
      %p83 = scmp.eq.s32.totalorder %s82, 0
      %s85 = sadd.s32 %s84, 1
      %s86 = scalar_select %p83, %s84, %s85
      %p89 = pneg %p83
      %p90 = scmp.eq.s32.totalorder %s11, 7
      %p91 = por %p89, %p90
      %p92 = scmp.ne.s32.totalorder %s84, %s87
      %p93 = scmp.eq.s32.totalorder %s11, 0
      %p94 = por %p92, %p93
      %p95 = scmp.ne.s32.totalorder %s84, %s87
      %p96 = scmp.eq.s32.totalorder %s16, 7
      %p97 = por %p95, %p96
      %p98 = scmp.ne.s32.totalorder %s87, %s88
      %p99 = scmp.eq.s32.totalorder %s16, 0
      %p100 = por %p98, %p99
      %p101 = scmp.ne.s32.totalorder %s87, %s88
      %p102 = scmp.eq.s32.totalorder %s17, 7
      %p103 = por %p101, %p102
      %p105 = scmp.ne.s32.totalorder %s88, %s104
      %p106 = scmp.eq.s32.totalorder %s17, 0
      %p107 = por %p105, %p106
      %p108 = scmp.le.s32.totalorder 1, %s11
      %p109 = scmp.lt.s32.totalorder %s11, 9
      %p110 = pnand %p108, %p109
      %p111 = pneg %p110
      // Predicated region
      $region9: #{belief_rollout.1} parent=5 // pred_check
        _
      $region10: #{belief_rollout.1} parent=5 // pred_check_branch
        %113 = sbr.rel (%p110) target = $region12
      $region11: #{belief_rollout.1} parent=5 // pred_region
        %s114 = ssub.s32 %s11, 1
        // Predicated region
        $region13: #{belief_rollout.1} parent=11 // pred_check
          %p115 = pneg %p32
        $region14: #{belief_rollout.1} parent=11 // pred_check_branch
          %117 = sbr.rel (%p115) target = $region16
        $region15: #{belief_rollout.1} parent=11 // pred_region
          %s119 = ssub.s32 16, 16
          %120 = vsyncadd [#allocation5], %s119
          %s122 = sshll.u32 %s0, 4
          %s123 = int_to_ptr.vmem [resolvable:$true] %s122
          %125 = dma.vmem_to_smem %s123, 16, [#allocation4], [#allocation5]
        $region16: #{belief_rollout.1} parent=11 // pred_fallthru
          _
        // Predicated region
        $region17: #{belief_rollout.1} parent=11 // pred_check
          %p126 = pneg %p53
        $region18: #{belief_rollout.1} parent=11 // pred_check_branch
          %128 = sbr.rel (%p126) target = $region20
        $region19: #{belief_rollout.1} parent=11 // pred_region
          %s130 = ssub.s32 16, 16
          %131 = vsyncadd [#allocation7], %s130
          %s133 = sshll.u32 %s1, 4
          %s134 = int_to_ptr.vmem [resolvable:$true] %s133
          %136 = dma.vmem_to_smem %s134, 16, [#allocation6], [#allocation7]
        $region20: #{belief_rollout.1} parent=11 // pred_fallthru
          _
        // Predicated region
        $region21: #{belief_rollout.1} parent=11 // pred_check
          %p137 = pneg %p74
        $region22: #{belief_rollout.1} parent=11 // pred_check_branch
          %139 = sbr.rel (%p137) target = $region24
        $region23: #{belief_rollout.1} parent=11 // pred_region
          _
        $region24: #{belief_rollout.1} parent=11 // pred_fallthru
          _
      $region12: #{belief_rollout.1} parent=5 // pred_fallthru
        _
      %p140 = scmp.lt.s32.totalorder %s11, 8
      // Predicated region
      $region25: #{belief_rollout.1} parent=5 // pred_check
        %p141 = pneg %p140
      $region26: #{belief_rollout.1} parent=5 // pred_check_branch
        %143 = sbr.rel (%p141) target = $region28
      $region27: #{belief_rollout.1} parent=5 // pred_region
        _
      $region28: #{belief_rollout.1} parent=5 // pred_fallthru
        _
      %p144 = scmp.le.s32.totalorder 1, %s11
      %p145 = scmp.lt.s32.totalorder %s11, 9
      %p146 = pnand %p144, %p145
      %p147 = pneg %p146
      // Predicated region
      $region29: #{belief_rollout.1} parent=5 // pred_check
        _
      $region30: #{belief_rollout.1} parent=5 // pred_check_branch
        %149 = sbr.rel (%p146) target = $region32
      $region31: #{belief_rollout.1} parent=5 // pred_region
        %s150 = ssub.s32 %s11, 1
        // Predicated region
        $region33: #{belief_rollout.1} parent=31 // pred_check
          %p151 = pneg %p32
        $region34: #{belief_rollout.1} parent=31 // pred_check_branch
          %153 = sbr.rel (%p151) target = $region36
        $region35: #{belief_rollout.1} parent=31 // pred_region
          %154 = dma.done [#allocation5], 16
        $region36: #{belief_rollout.1} parent=31 // pred_fallthru
          _
        // Predicated region
        $region37: #{belief_rollout.1} parent=31 // pred_check
          %p155 = pneg %p53
        $region38: #{belief_rollout.1} parent=31 // pred_check_branch
          %157 = sbr.rel (%p155) target = $region40
        $region39: #{belief_rollout.1} parent=31 // pred_region
          %158 = dma.done [#allocation7], 16
        $region40: #{belief_rollout.1} parent=31 // pred_fallthru
          _
        %159 = sfence
        %p160 = pneg %p32
        %p161 = pneg %p29
        %p162 = pneg %p53
        %p163 = pneg %p50
        %p164 = pneg %p74
        %p165 = pneg %p71
        %p166 = pneg %p100
        %p167 = pneg %p97
        %p168 = scmp.lt.s32.totalorder %s16, 7
        %s169 = scalar_select %p168, %s16, 7
        %s170 = smul.addr %s169, 8
        %s171 = scalar_lea.vmem %s3, %s170
        %p172 = scmp.lt.s32.totalorder %s16, 7
        %s173 = scalar_select %p172, %s16, 7
        %s174 = smul.addr %s173, 8
        %s175 = scalar_lea.vmem %s3, %s174
        %v176 = vlaneseq
        %v177 = vshrl.u32 %v176, 7
        %v178 = vlaneseq
        %v179 = vand.u32 %v178, 127
        %p180 = scmp.eq.s32.totalorder %s16, 0
        // Predicated region
        $region41: #{belief_rollout.1} parent=31 // pred_check
          %p181 = pneg %p180
        $region42: #{belief_rollout.1} parent=31 // pred_check_branch
          %183 = sbr.rel (%p181) target = $region44
        $region43: #{belief_rollout.1} parent=31 // pred_region
          %v184 = vld [vmem:[%s2] sm:$0xff]
          %vm185 = vcmask 64512
          %186 = vst.msk [vmem:[#allocation2] sm:$0xff] %vm185, %v184
          %s187 = scalar_lea.vmem %s2, 8
          %v188 = vld [vmem:[%s187] sm:$0xff]
          %189 = vst.msk [vmem:[#allocation3] sm:$0xff] %vm185, %v188
        $region44: #{belief_rollout.1} parent=31 // pred_fallthru
          _
        %s190 = smul.u32 %s16, 6
        %s191 = sld [smem:[#allocation6]]
        %v192 = vstv %s191
        %s193 = sld [smem:[#allocation6 + $0x1]]
        %v194 = vstv %s193
        %s195 = sld [smem:[#allocation6 + $0x2]]
        %v196 = vstv %s195
        %s197 = sld [smem:[#allocation6 + $0x3]]
        %v198 = vstv %s197
        %s199 = sld [smem:[#allocation6 + $0x4]]
        %v200 = vstv %s199
        %s201 = sld [smem:[#allocation6 + $0x5]]
        %v202 = vstv %s201
        %s203 = sld [smem:[#allocation6 + $0x6]]
        %v204 = vstv %s203
        %s205 = sld [smem:[#allocation6 + $0x7]]
        %v206 = vstv %s205
        %s207 = sld [smem:[#allocation6 + $0x8]]
        %v208 = vstv %s207
        %s209 = sld [smem:[#allocation6 + $0x9]]
        %v210 = vstv %s209
        %s211 = sld [smem:[#allocation4 + %s190]]
        %v212 = vstv %s211
        %s213 = sadd.s32 %s190, 1
        %s214 = sld [smem:[#allocation4 + %s213]]
        %v215 = vstv %s214
        %s216 = sadd.s32 %s190, 2
        %s217 = sld [smem:[#allocation4 + %s216]]
        %v218 = vstv %s217
        %s219 = sadd.s32 %s190, 3
        %s220 = sld [smem:[#allocation4 + %s219]]
        %v221 = vstv %s220
        %s222 = sadd.s32 %s190, 4
        %s223 = sld [smem:[#allocation4 + %s222]]
        %v224 = vstv %s223
        %s225 = sadd.s32 %s190, 5
        %s226 = sld [smem:[#allocation4 + %s225]]
        %v227 = vstv %s226
        %v228 = vld [vmem:[#allocation2] sm:$0xff]
        %v229 = vld [vmem:[#allocation3] sm:$0xff]
        %s230 = scalar_lea.vmem %s2, 16
        %v231 = vld [vmem:[%s230] sm:$0xff]
        %233 = vset.pattern.permute.xlu0 2
        %234 = vperm.xlu0 %233, %v229
        %v235 = vpop.permute.xlu0 %234
        %v237 = vmul.f32 %v192, %v212
        %v238 = vmul.f32 %v194, %v215
        %v239 = vmul.f32 %v238, 0.1
        %v240 = vadd.f32 %v235, %v239
        %v241 = vmul.f32 %v240, 0.15915494
        %v242 = vfloor.f32 %v241
        %v243 = vmul.f32 %v242, 6.2831855
        %v244 = vsub.f32 %v240, %v243
        %vm245 = vcmp.gt.f32.partialorder %v244, 3.1415927
        %v246 = vsub.f32 %v244, 6.2831855
        %v247 = vsel %vm245, %v246, %v244
        %v248 = vand.u32 2147483647, %v247
        %vm249 = vcmp.le.f32.partialorder %v248, 0.7853982
        %vm250 = vcmp.lt.s32.totalorder %v247, 0
        %v251 = vand.u32 %v247, 2139095040
        %v252 = vshrl.u32 %v251, 23
        %v253 = vsub.s32 %v252, 127
        %v254 = vand.u32 2147483647, %v247
        %v255 = vand.u32 %v254, 8388607
        %v256 = vor.u32 %v255, 8388608
        %v257 = vsub.s32 0, %v256
        %v258 = vadd.s32 %v253, 1
        %vm259 = vcmp.gt.s32.totalorder %v258, 0
        %v260 = vsel %vm259, %v258, 0
        %v261 = vshrl.u32 %v260, 5
        %v262 = vand.u32 %v260, 31
        %v263 = vsub.s32 32, %v262
        %v264 = vshrl.u32 683565275, %v263
        %v265 = vshll.u32 683565275, %v262
        %v266 = vshrl.u32 2475754826, %v263
        %v267 = vor.u32 %v265, %v266
        %v268 = vshll.u32 2475754826, %v262
        %v269 = vshrl.u32 2131351028, %v263
        %v270 = vor.u32 %v268, %v269
        %v271 = vshll.u32 2131351028, %v262
        %v272 = vshrl.u32 2102212464, %v263
        %v273 = vor.u32 %v271, %v272
        %v274 = vshll.u32 2102212464, %v262
        %v275 = vshrl.u32 920167782, %v263
        %v276 = vor.u32 %v274, %v275
        %v277 = vshll.u32 920167782, %v262
        %v278 = vshrl.u32 1326507024, %v263
        %v279 = vor.u32 %v277, %v278
        %vm280 = vcmp.lt.s32.totalorder %v261, 1
        %vm281 = vcmp.lt.s32.totalorder %v261, 2
        %vm282 = vcmp.lt.s32.totalorder %v261, 3
        %vm283 = vcmp.lt.s32.totalorder %v261, 4
        %v284 = vsel %vm280, %v264, %v267
        %v285 = vsel %vm283, %v273, 2102212464
        %v286 = vsel %vm282, %v270, %v285
        %v287 = vsel %vm281, %v284, %v286
        %v288 = vsel %vm280, %v267, %v270
        %v289 = vsel %vm283, %v276, 920167782
        %v290 = vsel %vm282, %v273, %v289
        %v291 = vsel %vm281, %v288, %v290
        %v292 = vsel %vm280, %v270, %v273
        %v293 = vsel %vm283, %v279, 1326507024
        %v294 = vsel %vm282, %v276, %v293
        %v295 = vsel %vm281, %v292, %v294
        %v296 = vshll.u32 %v256, 8
        %v297 = vmul.u32.u64.compose %v296, %v295
        %v298 = vextract.low.u32 %v297
        %v299 = vextract.high.u32 %v297
        %v300 = vmul.u32.u64.compose %v296, %v291
        %v301 = vextract.low.u32 %v300
        %v302 = vextract.high.u32 %v300
        %v303 = vmul.u32 %v296, %v287
        %v304 = vadd.s32 %v299, %v301
        %vm305 = vc.u32 %v299, %v301
        %v306 = vadd.s32 %v302, 1
        %v307 = vsel %vm305, %v306, %v302
        %v308 = vadd.s32 %v303, %v307
        %v309 = vadd.s32 %v308, 536870912
        %v310 = vshrl.u32 %v309, 30
        %v311 = vshll.u32 %v310, 30
        %v312 = vsub.s32 %v308, %v311
        %vm313 = vcmp.lt.s32.totalorder %v312, 0
        %v314 = vsub.s32 0, %v312
        %v315 = vsel %vm313, %v314, %v312
        %v316 = vclz %v315
        %v317 = vsub.s32 %v316, 2
        %vm318 = vcmp.gt.s32.totalorder 0, %v317
        %v319 = vsel %vm318, 0, %v317
        %v320 = vsub.s32 32, %v319
        %v321 = vshll.u32 %v312, %v319
        %v322 = vshrl.u32 %v304, %v320
        %v323 = vor.u32 %v321, %v322
        %v324 = vsub.s32 4294967266, %v319
        %v325 = vadd.s32 %v324, 127
        %v326 = vshll.u32 %v325, 23
        %v327 = vor.u32 4788187, %v326
        %v328 = vand.u32 2147483647, %v327
        %v330 = vcvt.s32.f32 %v323
        %v331 = vmul.f32 %v330, %v328
        %v332 = vxor.u32 %v331, 2147483648
        %v333 = vsel %vm250, %v332, %v331
        %v334 = vsub.s32 4, %v310
        %v335 = vsel %vm250, %v334, %v310
        %v336 = vsel %vm249, %v247, %v333
        %v337 = vsel %vm249, 0, %v335
        %v338 = vcosq.f32.pop %v336
        %v339 = vsinq.f32.pop %v336
        %vm340 = vweird.f32 %v247
        %v341 = vand.u32 %v337, 3
        %vm342 = vcmp.lt.s32.totalorder %v341, 2
        %vm343 = vcmp.eq.s32.totalorder %v341, 0
        %v344 = vxor.u32 %v339, 2147483648
        %v345 = vsel %vm343, %v338, %v344
        %vm346 = vcmp.eq.s32.totalorder %v341, 2
        %v347 = vxor.u32 %v338, 2147483648
        %v348 = vsel %vm346, %v347, %v339
        %v349 = vsel %vm342, %v345, %v348
        %v350 = vsel %vm340, nan, %v349
        %v351 = vand.u32 2147483647, %v247
        %vm352 = vcmp.le.f32.partialorder %v351, 0.7853982
        %vm353 = vcmp.lt.s32.totalorder %v247, 0
        %v354 = vand.u32 %v247, 2139095040
        %v355 = vshrl.u32 %v354, 23
        %v356 = vsub.s32 %v355, 127
        %v357 = vand.u32 2147483647, %v247
        %v358 = vand.u32 %v357, 8388607
        %v359 = vor.u32 %v358, 8388608
        %v360 = vsub.s32 0, %v359
        %v361 = vadd.s32 %v356, 1
        %vm362 = vcmp.gt.s32.totalorder %v361, 0
        %v363 = vsel %vm362, %v361, 0
        %v364 = vshrl.u32 %v363, 5
        %v365 = vand.u32 %v363, 31
        %v366 = vsub.s32 32, %v365
        %v367 = vshrl.u32 683565275, %v366
        %v368 = vshll.u32 683565275, %v365
        %v369 = vshrl.u32 2475754826, %v366
        %v370 = vor.u32 %v368, %v369
        %v371 = vshll.u32 2475754826, %v365
        %v372 = vshrl.u32 2131351028, %v366
        %v373 = vor.u32 %v371, %v372
        %v374 = vshll.u32 2131351028, %v365
        %v375 = vshrl.u32 2102212464, %v366
        %v376 = vor.u32 %v374, %v375
        %v377 = vshll.u32 2102212464, %v365
        %v378 = vshrl.u32 920167782, %v366
        %v379 = vor.u32 %v377, %v378
        %v380 = vshll.u32 920167782, %v365
        %v381 = vshrl.u32 1326507024, %v366
        %v382 = vor.u32 %v380, %v381
        %vm383 = vcmp.lt.s32.totalorder %v364, 1
        %vm384 = vcmp.lt.s32.totalorder %v364, 2
        %vm385 = vcmp.lt.s32.totalorder %v364, 3
        %vm386 = vcmp.lt.s32.totalorder %v364, 4
        %v387 = vsel %vm383, %v367, %v370
        %v388 = vsel %vm386, %v376, 2102212464
        %v389 = vsel %vm385, %v373, %v388
        %v390 = vsel %vm384, %v387, %v389
        %v391 = vsel %vm383, %v370, %v373
        %v392 = vsel %vm386, %v379, 920167782
        %v393 = vsel %vm385, %v376, %v392
        %v394 = vsel %vm384, %v391, %v393
        %v395 = vsel %vm383, %v373, %v376
        %v396 = vsel %vm386, %v382, 1326507024
        %v397 = vsel %vm385, %v379, %v396
        %v398 = vsel %vm384, %v395, %v397
        %v399 = vshll.u32 %v359, 8
        %v400 = vmul.u32.u64.compose %v399, %v398
        %v401 = vextract.low.u32 %v400
        %v402 = vextract.high.u32 %v400
        %v403 = vmul.u32.u64.compose %v399, %v394
        %v404 = vextract.low.u32 %v403
        %v405 = vextract.high.u32 %v403
        %v406 = vmul.u32 %v399, %v390
        %v407 = vadd.s32 %v402, %v404
        %vm408 = vc.u32 %v402, %v404
        %v409 = vadd.s32 %v405, 1
        %v410 = vsel %vm408, %v409, %v405
        %v411 = vadd.s32 %v406, %v410
        %v412 = vadd.s32 %v411, 536870912
        %v413 = vshrl.u32 %v412, 30
        %v414 = vshll.u32 %v413, 30
        %v415 = vsub.s32 %v411, %v414
        %vm416 = vcmp.lt.s32.totalorder %v415, 0
        %v417 = vsub.s32 0, %v415
        %v418 = vsel %vm416, %v417, %v415
        %v419 = vclz %v418
        %v420 = vsub.s32 %v419, 2
        %vm421 = vcmp.gt.s32.totalorder 0, %v420
        %v422 = vsel %vm421, 0, %v420
        %v423 = vsub.s32 32, %v422
        %v424 = vshll.u32 %v415, %v422
        %v425 = vshrl.u32 %v407, %v423
        %v426 = vor.u32 %v424, %v425
        %v427 = vsub.s32 4294967266, %v422
        %v428 = vadd.s32 %v427, 127
        %v429 = vshll.u32 %v428, 23
        %v430 = vor.u32 4788187, %v429
        %v431 = vand.u32 2147483647, %v430
        %v433 = vcvt.s32.f32 %v426
        %v434 = vmul.f32 %v433, %v431
        %v435 = vxor.u32 %v434, 2147483648
        %v436 = vsel %vm353, %v435, %v434
        %v437 = vsub.s32 4, %v413
        %v438 = vsel %vm353, %v437, %v413
        %v439 = vsel %vm352, %v247, %v436
        %v440 = vsel %vm352, 0, %v438
        %v441 = vcosq.f32.pop %v439
        %v442 = vsinq.f32.pop %v439
        %vm443 = vweird.f32 %v247
        %v444 = vadd.s32 %v440, 3
        %v445 = vand.u32 %v444, 3
        %vm446 = vcmp.lt.s32.totalorder %v445, 2
        %vm447 = vcmp.eq.s32.totalorder %v445, 0
        %v448 = vxor.u32 %v442, 2147483648
        %v449 = vsel %vm447, %v441, %v448
        %vm450 = vcmp.eq.s32.totalorder %v445, 2
        %v451 = vxor.u32 %v441, 2147483648
        %v452 = vsel %vm450, %v451, %v442
        %v453 = vsel %vm446, %v449, %v452
        %v454 = vsel %vm443, nan, %v453
        %v455 = vsub.f32 0.0, %v237
        %v456 = vmul.f32 %v455, %v454
        %v457 = vmul.f32 %v456, 0.1
        %v458 = vmul.f32 %v237, %v350
        %v459 = vmul.f32 %v458, 0.1
        %v460 = vlaneseq
        %v461 = vshrl.u32 %v460, 7
        %v462 = vsub.s32 2, %v461
        %v463 = vrot.slane %v228, %v462
        %vm464 = vcmp.lt.s32.totalorder %v177, 3
        %v465 = vsel %vm464, %v228, 0.0
        %vm466 = vcmp.eq.s32.totalorder %v177, 0
        %v467 = vmul.f32 %v457, %v463
        %v468 = vsel %vm466, %v467, 0.0
        %v469 = vadd.f32 %v465, %v468
        %vm470 = vcmp.eq.s32.totalorder %v177, 1
        %v471 = vmul.f32 %v459, %v463
        %v472 = vsel %vm470, %v471, 0.0
        %v473 = vadd.f32 %v469, %v472
        %475 = vset.pattern.permute.xlu0 2
        %476 = vperm.xlu0 %475, %v473
        %v477 = vpop.permute.xlu0 %476
        %vm479 = vcmp.lt.s32.totalorder %v179, 3
        %v480 = vsel %vm479, %v473, 0.0
        %vm481 = vcmp.eq.s32.totalorder %v179, 0
        %v482 = vmul.f32 %v457, %v477
        %v483 = vsel %vm481, %v482, 0.0
        %v484 = vadd.f32 %v480, %v483
        %vm485 = vcmp.eq.s32.totalorder %v179, 1
        %v486 = vmul.f32 %v459, %v477
        %v487 = vsel %vm485, %v486, 0.0
        %v488 = vadd.f32 %v484, %v487
        %v489 = vadd.f32 %v488, %v231
        %v490 = vmul.f32 %v237, %v237
        %v491 = vmul.f32 %v490, %v208
        %v492 = vadd.f32 %v491, %v204
        %v493 = vmul.f32 %v238, %v238
        %v494 = vmul.f32 %v493, %v210
        %v495 = vadd.f32 %v494, %v206
        %v496 = vmul.f32 %v196, %v196
        %v497 = vmul.f32 %v496, %v200
        %v498 = vadd.f32 %v497, %v492
        %v499 = vmul.f32 %v198, %v198
        %v500 = vmul.f32 %v499, %v202
        %v501 = vadd.f32 %v500, %v495
        %v502 = vrcp.pop %v498
        %v503 = vrcp.pop %v501
        %v504 = vmul.f32 %v196, %v200
        %v505 = vmul.f32 %v504, %v502
        %v506 = vmul.f32 %v198, %v202
        %v507 = vmul.f32 %v506, %v503
        %v508 = vmul.f32 %v237, %v224
        %v509 = vadd.f32 %v508, %v218
        %v510 = vmul.f32 %v238, %v227
        %v511 = vadd.f32 %v510, %v221
        %v512 = vsel %vm481, %v459, 0.0
        %v513 = vmul.f32 %v237, %v454
        %v514 = vmul.f32 %v513, 0.1
        %v515 = vsel %vm485, %v514, 0.0
        %v516 = vadd.f32 %v512, %v515
        %vm517 = vcmp.lt.s32.totalorder %v179, 2
        %v518 = vadd.f32 %v229, %v516
        %v519 = vmax.f32 %v518, -1.0
        %v520 = vmin.f32 %v519, 1.0
        %v521 = vsel %vm517, %v520, 0.0
        %vm522 = vcmp.eq.s32.totalorder %v179, 2
        %v523 = vsel %vm522, %v247, 0.0
        %v524 = vadd.f32 %v521, %v523
        %vm525 = vcmp.eq.s32.totalorder %v179, 3
        %v526 = vmul.f32 %v505, %v509
        %v527 = vadd.f32 %v237, %v526
        %v528 = vsel %vm525, %v527, 0.0
        %v529 = vadd.f32 %v524, %v528
        %vm530 = vcmp.eq.s32.totalorder %v179, 4
        %v531 = vmul.f32 %v507, %v511
        %v532 = vadd.f32 %v238, %v531
        %v533 = vsel %vm530, %v532, 0.0
        %v534 = vadd.f32 %v529, %v533
        %v535 = vmul.f32 %v505, %v196
        %v536 = vsub.f32 1.0, %v535
        %v537 = vmul.f32 %v507, %v198
        %v538 = vsub.f32 1.0, %v537
        %v539 = vsel %vm464, 1.0, 0.0
        %vm540 = vcmp.eq.s32.totalorder %v177, 3
        %v541 = vsel %vm540, %v536, 0.0
        %v542 = vadd.f32 %v539, %v541
        %vm543 = vcmp.eq.s32.totalorder %v177, 4
        %v544 = vsel %vm543, %v538, 0.0
        %v545 = vadd.f32 %v542, %v544
        %v546 = vmul.f32 %v545, %v489
        %vm547 = vcmp.eq.s32.totalorder %v177, %v179
        %vm548 = vcmp.lt.s32.totalorder %v177, 5
        %vm549 = vmand %vm547, %vm548
        %v550 = vsel %vm549, 1.0, 0.0
        %551 = vxpose.xlu0.b32.start [1/16] %v546, 128
        %552 = vxpose.xlu0.b32.cont [2/16] 0.0, 128
        %553 = vxpose.xlu0.b32.cont [3/16] 0.0, 128
        %554 = vxpose.xlu0.b32.cont [4/16] 0.0, 128
        %555 = vxpose.xlu0.b32.cont [5/16] 0.0, 128
        %556 = vxpose.xlu0.b32.cont [6/16] 0.0, 128
        %557 = vxpose.xlu0.b32.cont [7/16] 0.0, 128
        %558 = vxpose.xlu0.b32.cont [8/16] 0.0, 128
        %559 = vxpose.xlu0.b32.cont [9/16] 0.0, 128
        %560 = vxpose.xlu0.b32.cont [10/16] 0.0, 128
        %561 = vxpose.xlu0.b32.cont [11/16] 0.0, 128
        %562 = vxpose.xlu0.b32.cont [12/16] 0.0, 128
        %563 = vxpose.xlu0.b32.cont [13/16] 0.0, 128
        %564 = vxpose.xlu0.b32.cont [14/16] 0.0, 128
        %565 = vxpose.xlu0.b32.cont [15/16] 0.0, 128
        %566 = vxpose.xlu0.b32.end [16/16] 0.0, 128
        %v567 = vpop.trf.xlu0
        %v568 = vpop.trf.xlu0
        %v569 = vpop.trf.xlu0
        %v570 = vpop.trf.xlu0
        %v571 = vpop.trf.xlu0
        %v572 = vpop.trf.xlu0
        %v573 = vpop.trf.xlu0
        %v574 = vpop.trf.xlu0
        %v575 = vpop.trf.xlu0
        %v576 = vpop.trf.xlu0
        %v577 = vpop.trf.xlu0
        %v578 = vpop.trf.xlu0
        %v579 = vpop.trf.xlu0
        %v580 = vpop.trf.xlu0
        %v581 = vpop.trf.xlu0
        %v582 = vpop.trf.xlu0
        %v583 = vadd.f32 %v546, %v567
        %v584 = vmul.f32 %v583, 0.5
        %v585 = vmul.f32 %v550, 1e-06
        %v586 = vadd.f32 %v584, %v585
        %vm587 = vcmask 64512
        %588 = vst.msk [vmem:[#allocation2] sm:$0xff] %vm587, %v586
        %589 = vst.msk [vmem:[#allocation3] sm:$0xff] %vm587, %v534
        %vm590 = vcmp.eq.s32.totalorder %v179, 5
        %v591 = vsel %vm590, %v505, 0.0
        %v592 = vadd.f32 %v534, %v591
        %vm593 = vcmp.eq.s32.totalorder %v179, 6
        %v594 = vsel %vm593, %v507, 0.0
        %v595 = vadd.f32 %v592, %v594
        %597 = vrot.lane.b32.xlu0 %v595, 8
        %v598 = vpop.permute.xlu0 %597
        %v600 = vsel %vm587, %v586, %v598
        %vm601 = vcmask 130048
        %602 = vst.msk [vmem:[%s175] sm:$0xff] %vm601, %v600
        %p603 = scmp.lt.s32.totalorder %s16, 7
        %s604 = scalar_select %p603, %s16, 7
        %s605 = smul.addr %s604, 8
        %s606 = scalar_lea.vmem %s3, %s605
        // Predicated region
        $region45: #{belief_rollout.1} parent=31 // pred_check
          %p607 = pneg %p97
        $region46: #{belief_rollout.1} parent=31 // pred_check_branch
          %609 = sbr.rel (%p607) target = $region48
        $region47: #{belief_rollout.1} parent=31 // pred_region
          _
        $region48: #{belief_rollout.1} parent=31 // pred_fallthru
          _
      $region32: #{belief_rollout.1} parent=5 // pred_fallthru
        _
      %p610 = scmp.le.s32.totalorder 2, %s11
      // Predicated region
      $region49: #{belief_rollout.1} parent=5 // pred_check
        %p611 = pneg %p610
      $region50: #{belief_rollout.1} parent=5 // pred_check_branch
        %613 = sbr.rel (%p611) target = $region52
      $region51: #{belief_rollout.1} parent=5 // pred_region
        %s614 = ssub.s32 %s11, 2
        // Predicated region
        $region53: #{belief_rollout.1} parent=51 // pred_check
          %p615 = pneg %p103
        $region54: #{belief_rollout.1} parent=51 // pred_check_branch
          %617 = sbr.rel (%p615) target = $region56
        $region55: #{belief_rollout.1} parent=51 // pred_region
          %p618 = scmp.lt.s32.totalorder %s17, 7
          %s619 = scalar_select %p618, %s17, 7
          %s620 = smul.addr %s619, 8
          %s621 = scalar_lea.vmem %s3, %s620
        $region56: #{belief_rollout.1} parent=51 // pred_fallthru
          _
      $region52: #{belief_rollout.1} parent=5 // pred_fallthru
        _
    $region6: #{belief_rollout.1} parent=1 // loop_footer
      %s15 = sadd.s32 1, %s11
    $region7: #{belief_rollout.1} parent=1 // loop_footer_branch
      %10 = sbr.rel target = $region3
    $region8: #{belief_rollout.1} parent=1 // loop_exit
      _
    %622 = vsyncpa [#allocation5], 1
    %s623 = scalar_lea.sflag [#allocation5], 1
    %624 = vsyncpa %s623, 1
    %625 = vsyncpa [#allocation7], 1

</llo_original>
